<compile_context>
chip_gen: v7x
topology: tpu7x:2x2x1
jax: 0.10.0
libtpu: 0.0.40
codegen_flags: <defaults>
</compile_context>

<pallas_src>
import functools
import numpy as np
import jax
import jax.numpy as jnp
from jax.experimental import pallas as pl
from jax.experimental.pallas import tpu as pltpu

_BF16 = jnp.bfloat16
_LOG2 = float(np.log(2.0))
_VMEM_LIMIT = 48 * 1024 * 1024   # safe on v5e/v6e (128 MiB) and v7x (64 MiB)

RESIDUE_ATOM_MASK = jnp.asarray(np.array([
    [1,1,1,1,1,1,1,1,1,1,1,1,1,1],[1,1,1,1,1,0,0,0,0,0,0,0,0,0],[1,1,1,1,1,1,1,1,1,1,1,0,0,0],
    [1,1,1,1,1,1,1,1,0,0,0,0,0,0],[1,1,1,1,1,1,1,1,0,0,0,0,0,0],[1,1,1,1,1,1,0,0,0,0,0,0,0,0],
    [1,1,1,1,1,1,1,1,1,0,0,0,0,0],[1,1,1,1,1,1,1,1,1,0,0,0,0,0],[1,1,1,1,0,0,0,0,0,0,0,0,0,0],
    [1,1,1,1,1,1,1,1,1,1,0,0,0,0],[1,1,1,1,1,1,1,1,0,0,0,0,0,0],[1,1,1,1,1,1,1,1,0,0,0,0,0,0],
    [1,1,1,1,1,1,1,1,1,0,0,0,0,0],[1,1,1,1,1,1,1,1,0,0,0,0,0,0],[1,1,1,1,1,1,1,1,1,1,1,0,0,0],
    [1,1,1,1,1,1,1,0,0,0,0,0,0,0],[1,1,1,1,1,1,0,0,0,0,0,0,0,0],[1,1,1,1,1,1,1,0,0,0,0,0,0,0],
    [1,1,1,1,1,1,1,1,1,1,1,1,1,1],[1,1,1,1,1,1,1,1,1,1,1,1,0,0],[1,1,1,1,1,1,1,0,0,0,0,0,0,0]],
    dtype=np.float32))


def _round_up(x, m):
    return ((x + m - 1) // m) * m


def _cparams(sem):
    return pltpu.CompilerParams(dimension_semantics=sem, vmem_limit_bytes=_VMEM_LIMIT)


def _ssp(x):
    # shifted softplus (stable form: only max/abs/exp/log, all Mosaic-supported elementwise ops)
    return jnp.maximum(x, 0.0) + jnp.log(1.0 + jnp.exp(-jnp.abs(x))) - _LOG2


def _bdot(a, b):
    """Batched matmul over the leading dim (3D x 3D), f32 accumulate on the MXU."""
    return jax.lax.dot_general(a, b, (((2,), (1,)), ((0,), (0,))),
                               preferred_element_type=jnp.float32)


# -------------------------------------------------------------- linear (+ fused input activation)

def _linear_kernel(x_ref, w_ref, b_ref, o_ref, *, act_in):
    x = x_ref[...]
    if act_in == "ssp":
        x = _ssp(x.astype(jnp.float32))
    y = jnp.dot(x.astype(_BF16), w_ref[...],
                preferred_element_type=jnp.float32) + b_ref[...]
    o_ref[...] = y.astype(o_ref.dtype)


def linear_pallas(x, w, b=None, act_in=None, out_dtype=jnp.float32, tm_max=2048):
    """y = (act(x)) @ w + b (PyTorch Linear, weight pre-transposed). bf16 weights, M-tiled."""
    K = x.shape[-1]
    Nout = w.shape[-1]
    lead = x.shape[:-1]
    x2 = x.reshape(-1, K)
    M = x2.shape[0]
    if b is None:
        b = jnp.zeros((Nout,), jnp.float32)
    b2 = jnp.asarray(b, jnp.float32).reshape(1, Nout)
    tm = min(tm_max, _round_up(M, 8))
    out = pl.pallas_call(
        functools.partial(_linear_kernel, act_in=act_in),
        out_shape=jax.ShapeDtypeStruct((M, Nout), out_dtype),
        grid_spec=pltpu.PrefetchScalarGridSpec(
            num_scalar_prefetch=0,
            grid=(pl.cdiv(M, tm),),
            in_specs=[
                pl.BlockSpec((tm, K), lambda i: (i, 0)),
                pl.BlockSpec((K, Nout), lambda i: (0, 0)),
                pl.BlockSpec((1, Nout), lambda i: (0, 0)),
            ],
            out_specs=pl.BlockSpec((tm, Nout), lambda i: (i, 0)),
        ),
        compiler_params=_cparams(("parallel",)),
    )(x2, jnp.asarray(w, _BF16), b2)
    return out.reshape(*lead, Nout)


# -------------------------------------------------------------- gaussian-smearing helpers (in-VMEM)

def _smear_flat(rij_ref, off_ref, coeff):
    """rij_ref: (TE, C*L, 1) f32, off_ref: (1, ec) f32 -> bf16 (TE, C*L, ec) expansion in VMEM."""
    ec = off_ref.shape[-1]
    off = off_ref[...].reshape(1, 1, ec)
    diff = rij_ref[...] - off
    return jnp.exp(coeff * diff * diff).astype(_BF16)


# -------------------------------------------------------------- sigma_D / sigma_D1 distance-bias MLP

def _sigma_kernel(rij_ref, off_ref, w1_ref, b1_ref, w2_ref, b2_ref, o_ref, *, coeff):
    TE = rij_ref.shape[0]
    dist = _smear_flat(rij_ref, off_ref, coeff)                       # [TE, CL, ec] bf16
    ec, H1 = w1_ref.shape
    H = w2_ref.shape[1]
    w1b = jnp.broadcast_to(w1_ref[...][None], (TE, ec, H1))
    h = _bdot(dist, w1b) + b1_ref[...].reshape(1, 1, H1)
    h = jnp.maximum(h, 0.0).astype(_BF16)
    w2b = jnp.broadcast_to(w2_ref[...][None], (TE, H1, H))
    out = _bdot(h, w2b) + b2_ref[...].reshape(1, 1, H)
    o_ref[...] = out.astype(o_ref.dtype)


def sigma_bias_pallas(rij, tp, offsets, coeff, te_max=32):
    """Fused GaussianSmearing -> Linear -> ReLU -> Linear.  rij [E,C,L] -> bias [E,C,L,heads] bf16."""
    E, C, L = rij.shape
    CL = C * L
    ec = offsets.shape[0]
    H1 = tp['w1'].shape[1]
    H = tp['w2'].shape[1]
    te = min(te_max, _round_up(E, 8))
    out = pl.pallas_call(
        functools.partial(_sigma_kernel, coeff=float(coeff)),
        out_shape=jax.ShapeDtypeStruct((E, CL, H), _BF16),
        grid_spec=pltpu.PrefetchScalarGridSpec(
            num_scalar_prefetch=0,
            grid=(pl.cdiv(E, te),),
            in_specs=[
                pl.BlockSpec((te, CL, 1), lambda i: (i, 0, 0)),
                pl.BlockSpec((1, ec), lambda i: (0, 0)),
                pl.BlockSpec((ec, H1), lambda i: (0, 0)),
                pl.BlockSpec((1, H1), lambda i: (0, 0)),
                pl.BlockSpec((H1, H), lambda i: (0, 0)),
                pl.BlockSpec((1, H), lambda i: (0, 0)),
            ],
            out_specs=pl.BlockSpec((te, CL, H), lambda i: (i, 0, 0)),
        ),
        compiler_params=_cparams(("parallel",)),
    )(rij.reshape(E, CL, 1).astype(jnp.float32),
      jnp.asarray(offsets, jnp.float32).reshape(1, ec),
      jnp.asarray(tp['w1'], _BF16),
      jnp.asarray(tp['b1'], jnp.float32).reshape(1, H1),
      jnp.asarray(tp['w2'], _BF16),
      jnp.asarray(tp['b2'], jnp.float32).reshape(1, H))
    return out.reshape(E, C, L, H)


# -------------------------------------------------------------- pair MLPs (T_i / T_e1 / T_e2)
# h[e,c,l,:] = dist[e,c,l,:]@w1_d + hq[e,c,:] + hk[e,l,:] + b1 ; f = relu(h)@w2 + b2
# The broadcast is realized with tiny 0/1 "repeat"/"tile" matmuls (rmat/smat) so everything stays
# in flattened (TE, C*L, *) layout -> only batched dot_generals + leading-dim reshapes in-kernel.

def _pair_branch(dist, rmat_b, smat_b, hq_ref, hk_ref, w1d_ref, b1_ref, w2_ref, b2_ref):
    TE, CL, ec = dist.shape
    H1 = w1d_ref.shape[1]
    w1b = jnp.broadcast_to(w1d_ref[...][None], (TE, ec, H1))
    h = _bdot(dist, w1b)
    h = h + _bdot(rmat_b, hq_ref[...]) + _bdot(smat_b, hk_ref[...])
    h = h + b1_ref[...].reshape(1, 1, H1)
    h = jnp.maximum(h, 0.0)
    w2row = w2_ref[...].reshape(1, 1, H1)
    f = jnp.sum(h * w2row, axis=-1, keepdims=True) + b2_ref[...].reshape(1, 1, 1)
    return f                                                           # [TE, CL, 1] f32


def _pair_mlp_kernel(hq_ref, hk_ref, rij_ref, off_ref, rmat_ref, smat_ref,
                     w1d_ref, b1_ref, w2_ref, b2_ref, o_ref, *, coeff):
    TE = rij_ref.shape[0]
    CL, C = rmat_ref.shape
    L = smat_ref.shape[1]
    dist = _smear_flat(rij_ref, off_ref, coeff)
    rmat_b = jnp.broadcast_to(rmat_ref[...][None], (TE, CL, C))
    smat_b = jnp.broadcast_to(smat_ref[...][None], (TE, CL, L))
    o_ref[...] = _pair_branch(dist, rmat_b, smat_b, hq_ref, hk_ref,
                              w1d_ref, b1_ref, w2_ref, b2_ref)


def _pair_mlp_dual_kernel(hq1_ref, hk1_ref, hq2_ref, hk2_ref, rij_ref, off_ref, rmat_ref, smat_ref,
                          w1d1_ref, b11_ref, w21_ref, b21_ref,
                          w1d2_ref, b12_ref, w22_ref, b22_ref,
                          o1_ref, o2_ref, *, coeff):
    TE = rij_ref.shape[0]
    CL, C = rmat_ref.shape
    L = smat_ref.shape[1]
    dist = _smear_flat(rij_ref, off_ref, coeff)
    rmat_b = jnp.broadcast_to(rmat_ref[...][None], (TE, CL, C))
    smat_b = jnp.broadcast_to(smat_ref[...][None], (TE, CL, L))
    o1_ref[...] = _pair_branch(dist, rmat_b, smat_b, hq1_ref, hk1_ref,
                               w1d1_ref, b11_ref, w21_ref, b21_ref)
    o2_ref[...] = _pair_branch(dist, rmat_b, smat_b, hq2_ref, hk2_ref,
                               w1d2_ref, b12_ref, w22_ref, b22_ref)


def _rep_tile_mats(C, L):
    rmat = jnp.asarray(np.repeat(np.eye(C, dtype=np.float32), L, axis=0), _BF16)  # [C*L, C]
    smat = jnp.asarray(np.tile(np.eye(L, dtype=np.float32), (C, 1)), _BF16)       # [C*L, L]
    return rmat, smat


def pair_mlp_pallas(hq, hk, rij, w1d, b1, w2, b2, offsets, coeff, te_max=16):
    """T(concat([Q_i, K_j, dist_ij])) per edge, broadcast + smearing fused in VMEM."""
    E, C, H1 = hq.shape
    L = hk.shape[1]
    CL = C * L
    ec = offsets.shape[0]
    te = min(te_max, _round_up(E, 8))
    rmat, smat = _rep_tile_mats(C, L)
    out = pl.pallas_call(
        functools.partial(_pair_mlp_kernel, coeff=float(coeff)),
        out_shape=jax.ShapeDtypeStruct((E, CL, 1), jnp.float32),
        grid_spec=pltpu.PrefetchScalarGridSpec(
            num_scalar_prefetch=0,
            grid=(pl.cdiv(E, te),),
            in_specs=[
                pl.BlockSpec((te, C, H1), lambda i: (i, 0, 0)),
                pl.BlockSpec((te, L, H1), lambda i: (i, 0, 0)),
                pl.BlockSpec((te, CL, 1), lambda i: (i, 0, 0)),
                pl.BlockSpec((1, ec), lambda i: (0, 0)),
                pl.BlockSpec((CL, C), lambda i: (0, 0)),
                pl.BlockSpec((CL, L), lambda i: (0, 0)),
                pl.BlockSpec((ec, H1), lambda i: (0, 0)),
                pl.BlockSpec((1, H1), lambda i: (0, 0)),
                pl.BlockSpec((1, H1), lambda i: (0, 0)),
                pl.BlockSpec((1, 1), lambda i: (0, 0)),
            ],
            out_specs=pl.BlockSpec((te, CL, 1), lambda i: (i, 0, 0)),
        ),
        compiler_params=_cparams(("parallel",)),
    )(hq.astype(_BF16), hk.astype(_BF16),
      rij.reshape(E, CL, 1).astype(jnp.float32),
      jnp.asarray(offsets, jnp.float32).reshape(1, ec),
      rmat, smat,
      jnp.asarray(w1d, _BF16),
      jnp.asarray(b1, jnp.float32).reshape(1, H1),
      jnp.asarray(w2, jnp.float32).reshape(1, H1),
      jnp.asarray(b2, jnp.float32).reshape(1, 1))
    return out.reshape(E, C, L)


def pair_mlp_dual_pallas(hq1, hk1, hq2, hk2, rij,
                         w1d1, b11, w21, b21, w1d2, b12, w22, b22,
                         offsets, coeff, te_max=16):
    """Fused T_e1 + T_e2: identical Rij/dist stream read once, two weight sets, two outputs."""
    E, C, H1 = hq1.shape
    L = hk1.shape[1]
    CL = C * L
    ec = offsets.shape[0]
    te = min(te_max, _round_up(E, 8))
    rmat, smat = _rep_tile_mats(C, L)
    edge_spec_c = pl.BlockSpec((te, C, H1), lambda i: (i, 0, 0))
    edge_spec_l = pl.BlockSpec((te, L, H1), lambda i: (i, 0, 0))
    outs = pl.pallas_call(
        functools.partial(_pair_mlp_dual_kernel, coeff=float(coeff)),
        out_shape=(jax.ShapeDtypeStruct((E, CL, 1), jnp.float32),
                   jax.ShapeDtypeStruct((E, CL, 1), jnp.float32)),
        grid_spec=pltpu.PrefetchScalarGridSpec(
            num_scalar_prefetch=0,
            grid=(pl.cdiv(E, te),),
            in_specs=[
                edge_spec_c, edge_spec_l, edge_spec_c, edge_spec_l,
                pl.BlockSpec((te, CL, 1), lambda i: (i, 0, 0)),
                pl.BlockSpec((1, ec), lambda i: (0, 0)),
                pl.BlockSpec((CL, C), lambda i: (0, 0)),
                pl.BlockSpec((CL, L), lambda i: (0, 0)),
                pl.BlockSpec((ec, H1), lambda i: (0, 0)),
                pl.BlockSpec((1, H1), lambda i: (0, 0)),
                pl.BlockSpec((1, H1), lambda i: (0, 0)),
                pl.BlockSpec((1, 1), lambda i: (0, 0)),
                pl.BlockSpec((ec, H1), lambda i: (0, 0)),
                pl.BlockSpec((1, H1), lambda i: (0, 0)),
                pl.BlockSpec((1, H1), lambda i: (0, 0)),
                pl.BlockSpec((1, 1), lambda i: (0, 0)),
            ],
            out_specs=[pl.BlockSpec((te, CL, 1), lambda i: (i, 0, 0)),
                       pl.BlockSpec((te, CL, 1), lambda i: (i, 0, 0))],
        ),
        compiler_params=_cparams(("parallel",)),
    )(hq1.astype(_BF16), hk1.astype(_BF16), hq2.astype(_BF16), hk2.astype(_BF16),
      rij.reshape(E, CL, 1).astype(jnp.float32),
      jnp.asarray(offsets, jnp.float32).reshape(1, ec),
      rmat, smat,
      jnp.asarray(w1d1, _BF16), jnp.asarray(b11, jnp.float32).reshape(1, H1),
      jnp.asarray(w21, jnp.float32).reshape(1, H1), jnp.asarray(b21, jnp.float32).reshape(1, 1),
      jnp.asarray(w1d2, _BF16), jnp.asarray(b12, jnp.float32).reshape(1, H1),
      jnp.asarray(w22, jnp.float32).reshape(1, H1), jnp.asarray(b22, jnp.float32).reshape(1, 1))
    return outs[0].reshape(E, C, L), outs[1].reshape(E, C, L)


# -------------------------------------------------------------- per-edge multi-head attention

def _edge_attn_body(q_ref, k_ref, v_ref, v2_ref, bias_ref, mask_ref,
                    amean_ref, r_ref, ores_ref, olig_ref, inv_sqrt_d, with_lig):
    TE, H, C, dh = q_ref.shape
    L = k_ref.shape[2]
    q = q_ref[...].reshape(TE * H, C, dh)
    k = k_ref[...].reshape(TE * H, L, dh)
    bias = bias_ref[...].astype(jnp.float32).reshape(TE * H, C, L)
    am = mask_ref[...]                                                 # [TE, C, L] f32
    amh = jnp.broadcast_to(am[:, None], (TE, H, C, L)).reshape(TE * H, C, L)

    logits = jax.lax.dot_general(
        q, k, (((2,), (2,)), ((0,), (0,))),
        preferred_element_type=jnp.float32) * inv_sqrt_d + bias        # [TE*H, C, L]

    # r_ij = masked mean of raw logits (guard fully-masked edges against 0/0)
    msum = jnp.sum(jnp.sum(amh, axis=-1, keepdims=True), axis=-2, keepdims=True)
    msum = jnp.maximum(msum, 1.0)
    r = jnp.sum(jnp.sum(logits * amh, axis=-1, keepdims=True), axis=-2, keepdims=True) / msum
    r_ref[...] = r.reshape(TE, H, 1, 1)

    # softmax over key atoms, mask, L1 renorm (exact divisions)
    m1 = jnp.max(logits, axis=-1, keepdims=True)
    e1 = jnp.exp(logits - m1)
    sm1 = e1 / jnp.sum(e1, axis=-1, keepdims=True)
    a_res = sm1 * amh
    n1 = jnp.sum(a_res, axis=-1, keepdims=True)
    a_res = a_res / (n1 + 1e-7)

    v = v_ref[...].reshape(TE * H, L, dh)
    out_res = jax.lax.dot_general(
        a_res.astype(_BF16), v, (((2,), (1,)), ((0,), (0,))),
        preferred_element_type=jnp.float32)                            # [TE*H, C, dh]
    ores_ref[...] = out_res.reshape(TE, H, C, dh).astype(ores_ref.dtype)

    if with_lig:
        n2 = jnp.sum(jnp.abs(a_res), axis=-1, keepdims=True)
        m2 = jnp.max(logits, axis=-2, keepdims=True)
        e2 = jnp.exp(logits - m2)
        sm2 = e2 / jnp.sum(e2, axis=-2, keepdims=True)
        a_lig = sm2 * amh / (n2 + 1e-7)
        v2 = v2_ref[...].reshape(TE * H, C, dh)
        out_lig = jax.lax.dot_general(
            a_lig.astype(_BF16), v2, (((1,), (1,)), ((0,), (0,))),
            preferred_element_type=jnp.float32)                        # [TE*H, L, dh]
        olig_ref[...] = out_lig.reshape(TE, H, L, dh).astype(olig_ref.dtype)
        a_sel = a_lig
    else:
        a_sel = a_res

    # head-mean of the selected attention map computed in-kernel (full maps never hit HBM).
    a4 = a_sel.reshape(TE, H, C, L)
    acc = a4[:, 0]
    for hh in range(1, H):
        acc = acc + a4[:, hh]
    amean_ref[...] = (acc * (1.0 / H)).astype(amean_ref.dtype)


def _make_edge_attn_kernel(inv_sqrt_d, with_lig):
    if with_lig:
        def kernel(q_ref, k_ref, v_ref, v2_ref, bias_ref, mask_ref,
                   amean_ref, r_ref, ores_ref, olig_ref):
            _edge_attn_body(q_ref, k_ref, v_ref, v2_ref, bias_ref, mask_ref,
                            amean_ref, r_ref, ores_ref, olig_ref, inv_sqrt_d, True)
    else:
        def kernel(q_ref, k_ref, v_ref, bias_ref, mask_ref,
                   amean_ref, r_ref, ores_ref):
            _edge_attn_body(q_ref, k_ref, v_ref, None, bias_ref, mask_ref,
                            amean_ref, r_ref, ores_ref, None, inv_sqrt_d, False)
    return kernel


def edge_attention_pallas(q, k, v, v2, bias, amask, with_lig, te_max=32):
    """q,v2: [E,H,C,d] bf16; k,v: [E,H,L,d] bf16; bias: [E,H,C,L] bf16; amask: [E,C,L] f32.
    Returns (head-mean attention [E,C,L] bf16, r_ij [E,H] f32, out_res [E,H,C,d] bf16
             [, out_lig [E,H,L,d] bf16])."""
    E, H, C, dh = q.shape
    L = k.shape[2]
    TE = min(te_max, _round_up(E, 8))
    inv_sqrt_d = 1.0 / float(np.sqrt(dh))
    # TODO(synk): attention operands are still narrow on the lane axis (dh/L < 128); a fully
    # lane-dense repack would need in-kernel head transposes and is left for a later pass.

    args = [q.astype(_BF16), k.astype(_BF16), v.astype(_BF16)]
    in_specs = [
        pl.BlockSpec((TE, H, C, dh), lambda e: (e, 0, 0, 0)),
        pl.BlockSpec((TE, H, L, dh), lambda e: (e, 0, 0, 0)),
        pl.BlockSpec((TE, H, L, dh), lambda e: (e, 0, 0, 0)),
    ]
    if with_lig:
        args.append(v2.astype(_BF16))
        in_specs.append(pl.BlockSpec((TE, H, C, dh), lambda e: (e, 0, 0, 0)))
    args += [bias.astype(_BF16), amask.astype(jnp.float32)]
    in_specs += [
        pl.BlockSpec((TE, H, C, L), lambda e: (e, 0, 0, 0)),
        pl.BlockSpec((TE, C, L), lambda e: (e, 0, 0)),
    ]

    out_shape = [
        jax.ShapeDtypeStruct((E, C, L), _BF16),
        jax.ShapeDtypeStruct((E, H, 1, 1), jnp.float32),
        jax.ShapeDtypeStruct((E, H, C, dh), _BF16),
    ]
    out_specs = [
        pl.BlockSpec((TE, C, L), lambda e: (e, 0, 0)),
        pl.BlockSpec((TE, H, 1, 1), lambda e: (e, 0, 0, 0)),
        pl.BlockSpec((TE, H, C, dh), lambda e: (e, 0, 0, 0)),
    ]
    if with_lig:
        out_shape.append(jax.ShapeDtypeStruct((E, H, L, dh), _BF16))
        out_specs.append(pl.BlockSpec((TE, H, L, dh), lambda e: (e, 0, 0, 0)))

    outs = pl.pallas_call(
        _make_edge_attn_kernel(inv_sqrt_d, with_lig),
        out_shape=tuple(out_shape),
        grid_spec=pltpu.PrefetchScalarGridSpec(
            num_scalar_prefetch=0,
            grid=(pl.cdiv(E, TE),),
            in_specs=in_specs,
            out_specs=out_specs,
        ),
        compiler_params=_cparams(("parallel",)),
    )(*args)

    if with_lig:
        amean, r, out_res, out_lig = outs
        return amean, r[:, :, 0, 0], out_res, out_lig
    amean, r, out_res = outs
    return amean, r[:, :, 0, 0], out_res


# -------------------------------------------------------------- JAX glue

def layer_norm(x, g, b, eps=1e-5):
    mu = jnp.mean(x, axis=-1, keepdims=True)
    var = jnp.mean((x - mu) ** 2, axis=-1, keepdims=True)
    return (x - mu) / jnp.sqrt(var + eps) * g + b


def scatter_sum(x, index, num_segments):
    return jax.ops.segment_sum(x, index, num_segments=num_segments)


def scatter_softmax(x, index, num_segments):
    xmax = jax.ops.segment_max(x, index, num_segments=num_segments)
    xmax = jnp.where(jnp.isfinite(xmax), xmax, 0.0)        # guard empty segments
    e = jnp.exp(x - xmax[index])
    denom = jax.ops.segment_sum(e, index, num_segments=num_segments)
    return e / denom[index]


def connect_edges(res_X, batch, k):
    """knn_graph(res_X[:,1], k, flow='target_to_source') + self loops.
    # TODO(synk): assumes every batch element has at least k+1 residues (same as the torch knn_graph path)."""
    N = res_X.shape[0]
    ca = res_X[:, 1]
    d2 = jnp.sum((ca[:, None, :] - ca[None, :, :]) ** 2, axis=-1)
    same = batch[:, None] == batch[None, :]
    d2 = jnp.where(same, d2, jnp.inf)
    d2 = jnp.where(jnp.eye(N, dtype=bool), jnp.inf, d2)
    nbr = jnp.argsort(d2, axis=1)[:, :k]
    row = jnp.concatenate([jnp.repeat(jnp.arange(N), k), jnp.arange(N)])
    col = jnp.concatenate([nbr.reshape(-1), jnp.arange(N)])
    return row, col


def init_params(key, hidden, ec, heads, cutoff=10.0, vocab=33):
    keys = jax.random.split(key, 40)
    it = iter(keys)

    def W(i, o, scale=0.1):
        return jax.random.normal(next(it), (i, o), jnp.float32) * scale

    p = {}
    for name in ['W_Q', 'W_K', 'W_V', 'W_K_lig', 'W_V_lig', 'W_O', 'W_O_lig', 'W_O_lig1']:
        p[name] = W(hidden, hidden)
    p['ln_g'] = jnp.ones((hidden,), jnp.float32)
    p['ln_b'] = jnp.zeros((hidden,), jnp.float32)
    p['ln1_g'] = jnp.ones((hidden,), jnp.float32)
    p['ln1_b'] = jnp.zeros((hidden,), jnp.float32)

    def mlp(i, h, o):
        return {'w1': W(i, h), 'b1': jnp.zeros((h,), jnp.float32),
                'w2': W(h, o), 'b2': jnp.zeros((o,), jnp.float32)}

    p['T_i'] = mlp(2 * hidden + ec, hidden, 1)
    p['T_e1'] = mlp(2 * hidden + ec, hidden, 1)
    p['T_e2'] = mlp(2 * hidden + ec, hidden, 1)
    p['sigma_D'] = mlp(ec, hidden, heads)
    p['sigma_D1'] = mlp(ec, hidden, heads)

    offset = jnp.linspace(0.0, cutoff, ec)
    p['gs_offset'] = offset
    p['gs_coeff'] = -0.5 / float(offset[1] - offset[0]) ** 2

    # stand-in ESM adapter (see TODO in forward)
    p['esm_tok_emb'] = W(vocab, hidden)
    p['esm_enc_w'] = W(hidden, hidden)
    p['esm_enc_b'] = jnp.zeros((hidden,), jnp.float32)
    p['esm_logit_w'] = W(hidden, vocab)
    p['esm_logit_b'] = jnp.zeros((vocab,), jnp.float32)
    return p


# -------------------------------------------------------------- BilevelEncoder

def bilevel_forward_once(p, res_H, res_X, res_S, batch, ligand_pos, ligand_feat,
                         ligand_mask, residue_mask, row1, col1, hidden, ec, heads, k):
    N, C, _ = res_X.shape
    d = hidden // heads
    B, Lc = ligand_feat.shape[0], ligand_feat.shape[1]
    atom_mask = RESIDUE_ATOM_MASK[res_S]                                   # [N, 14]
    row, col = connect_edges(res_X, batch, k)
    offs, coeff = p['gs_offset'], p['gs_coeff']

    # ---------------- residue / residue attention ----------------
    Rij = jnp.sqrt(jnp.sum((res_X[row][:, :, None, :] - res_X[col][:, None, :, :]) ** 2, -1))  # [E,C,C]
    res_H = layer_norm(res_H, p['ln_g'], p['ln_b'])
    Q = linear_pallas(res_H, p['W_Q'], out_dtype=_BF16).reshape(N, C, heads, d)
    K = linear_pallas(res_H, p['W_K'], out_dtype=_BF16).reshape(N, C, heads, d)
    V = linear_pallas(res_H, p['W_V'], out_dtype=_BF16).reshape(N, C, heads, d)

    bias = sigma_bias_pallas(Rij, p['sigma_D'], offs, coeff)               # [E,C,C,H] bf16
    bias = jnp.transpose(bias, (0, 3, 1, 2))                               # [E,H,C,C]
    q_e = jnp.transpose(Q[row], (0, 2, 1, 3))
    k_e = jnp.transpose(K[col], (0, 2, 1, 3))
    v_e = jnp.transpose(V[col], (0, 2, 1, 3))
    amask = atom_mask[row][:, :, None] * atom_mask[col][:, None, :]        # [E,C,C]

    amean, r_ij, out_res = edge_attention_pallas(q_e, k_e, v_e, None, bias, amask,
                                                 with_lig=False)
    beta = scatter_softmax(r_ij, row, N)                                   # [E,H]
    update_H = scatter_sum(beta[:, :, None, None] * out_res, row, N)       # [N,H,C,d]
    update_H = jnp.transpose(update_H, (0, 2, 1, 3)).reshape(N, C, hidden)
    res_H = res_H + linear_pallas(update_H, p['W_O'], act_in="ssp")        # W_O(act(.)) fused
    res_H = res_H * atom_mask[:, :, None]

    X_ij = res_X[row][:, :, None, :] - res_X[col][:, None, :, :]           # [E,C,C,3]
    X_ij = X_ij / (jnp.linalg.norm(X_ij, axis=-1, keepdims=True) + 1e-5)
    Q2 = Q.reshape(N, C, hidden)
    K2 = K.reshape(N, C, hidden)

    ti = p['T_i']
    hq_n = linear_pallas(Q2, ti['w1'][:hidden], out_dtype=_BF16)           # per-node projections,
    hk_n = linear_pallas(K2, ti['w1'][hidden:2 * hidden], out_dtype=_BF16)  # gathered per edge
    f = pair_mlp_pallas(hq_n[row], hk_n[col], Rij,
                        ti['w1'][2 * hidden:], ti['b1'], ti['w2'], ti['b2'], offs, coeff)  # [E,C,C]
    f = f * amean
    delta_X = scatter_sum(jnp.mean(beta, -1)[:, None, None] *
                          jnp.sum(f[..., None] * X_ij, axis=-2), row, N)   # [N,C,3]
    res_X = jnp.where(residue_mask[:, None, None],
                      res_X + jnp.clip(delta_X, -3.0, 3.0), res_X)

    # ---------------- residue / ligand attention ----------------
    E1 = row1.shape[0]
    ligand_feat = layer_norm(ligand_feat, p['ln1_g'], p['ln1_b'])
    K_lig = linear_pallas(ligand_feat, p['W_K_lig'], out_dtype=_BF16).reshape(B, Lc, heads, d)
    V_lig = linear_pallas(ligand_feat, p['W_V_lig'], out_dtype=_BF16).reshape(B, Lc, heads, d)
    Rij1 = jnp.sqrt(jnp.sum((res_X[row1][:, :, None, :] - ligand_pos[col1][:, None, :, :]) ** 2, -1))  # [E1,C,Lc]
    bias1 = sigma_bias_pallas(Rij1, p['sigma_D1'], offs, coeff)            # [E1,C,Lc,H] bf16
    bias1 = jnp.transpose(bias1, (0, 3, 1, 2))                             # [E1,H,C,Lc]
    q_e1 = jnp.transpose(Q[row1], (0, 2, 1, 3))
    k_e1 = jnp.transpose(K_lig[col1], (0, 2, 1, 3))
    v_e1 = jnp.transpose(V_lig[col1], (0, 2, 1, 3))
    v2_e1 = jnp.transpose(V[row1], (0, 2, 1, 3))
    amask1 = atom_mask[row1][:, :, None] * ligand_mask[col1][:, None, :]   # [E1,C,Lc]

    amean_lig, r1, out_res1, out_lig1 = edge_attention_pallas(
        q_e1, k_e1, v_e1, v2_e1, bias1, amask1, with_lig=True)
    beta1 = scatter_softmax(r1, col1, B)                                   # [E1,H]
    res_H = res_H.at[row1].add(linear_pallas(
        jnp.transpose(out_res1, (0, 2, 1, 3)).reshape(E1, C, hidden),
        p['W_O_lig'], act_in="ssp"))
    res_H = res_H * atom_mask[:, :, None]
    update_lig = scatter_sum(beta1[:, :, None, None] * out_lig1, col1, B)  # [B,H,Lc,d]
    ligand_feat = ligand_feat + linear_pallas(
        jnp.transpose(update_lig, (0, 2, 1, 3)).reshape(B, Lc, hidden),
        p['W_O_lig1'], act_in="ssp")

    X_ij1 = res_X[row1][:, :, None, :] - ligand_pos[col1][:, None, :, :]   # [E1,C,Lc,3]
    X_ij1 = X_ij1 / (jnp.linalg.norm(X_ij1, axis=-1, keepdims=True) + 1e-5)
    K_lig2 = K_lig.reshape(B, Lc, hidden)

    te1, te2 = p['T_e1'], p['T_e2']
    hq1 = linear_pallas(Q2, te1['w1'][:hidden], out_dtype=_BF16)[row1]
    hk1 = linear_pallas(K_lig2, te1['w1'][hidden:2 * hidden], out_dtype=_BF16)[col1]
    hq2 = linear_pallas(Q2, te2['w1'][:hidden], out_dtype=_BF16)[row1]
    hk2 = linear_pallas(K_lig2, te2['w1'][hidden:2 * hidden], out_dtype=_BF16)[col1]
    f_lig, f_res = pair_mlp_dual_pallas(
        hq1, hk1, hq2, hk2, Rij1,
        te1['w1'][2 * hidden:], te1['b1'], te1['w2'], te1['b2'],
        te2['w1'][2 * hidden:], te2['b1'], te2['w2'], te2['b2'],
        offs, coeff)                                                       # [E1,C,Lc] x2
    f_lig = f_lig * amean_lig
    f_res = f_res * amask1
    ligand_pos = ligand_pos + scatter_sum(
        jnp.mean(beta1, -1)[:, None, None] * jnp.sum(f_lig[..., None] * X_ij1, axis=1), col1, B)
    res_X = res_X.at[row1].add(
        jnp.clip(jnp.mean(f_res[..., None] * (-X_ij1), axis=-2), -3.0, 3.0))
    return res_H, res_X, ligand_pos, ligand_feat


def bilevel_encoder_forward(p, res_H, res_X, res_S, batch, full_seq, ligand_pos,
                            ligand_feat, ligand_mask, edit_residue_num, residue_mask,
                            full_seq_mask, r10_mask, *, hidden, ec, heads, k):
    B = int(np.asarray(batch).max()) + 1
    row1 = jnp.asarray(np.nonzero(np.asarray(residue_mask))[0], jnp.int32)
    col1 = jnp.asarray(np.repeat(np.arange(B), np.asarray(edit_residue_num)), jnp.int32)

    for _ in range(4):
        res_H, res_X, ligand_pos, ligand_feat = bilevel_forward_once(
            p, res_H, res_X, res_S, batch, ligand_pos, ligand_feat, ligand_mask,
            residue_mask, row1, col1, hidden, ec, heads, k)

    h_residue = jnp.sum(res_H, axis=-2)                                    # [N, hidden]
    Lfull = full_seq.shape[1]
    feats = jnp.zeros((B, Lfull, hidden), jnp.float32)
    bi, li = np.nonzero(np.asarray(r10_mask))
    feats = feats.at[jnp.asarray(bi), jnp.asarray(li)].set(h_residue)

    # TODO(synk): `esmadapter` is an external pretrained ESM-2 adapter module; a deterministic
    # linear decode head (token embedding + encoder-feature projection -> vocab logits) is
    # used as a stand-in here.
    tok = p['esm_tok_emb'][full_seq]                                       # [B, Lfull, hidden]
    enc = linear_pallas(feats, p['esm_enc_w'], p['esm_enc_b'])
    decode_logits = linear_pallas(tok + enc, p['esm_logit_w'], p['esm_logit_b'])
    mi, mj = np.nonzero(np.asarray(full_seq_mask))
    pred_res_type = decode_logits[jnp.asarray(mi), jnp.asarray(mj)][:, 4:24]
    return res_H, res_X, pred_res_type, ligand_pos


# -------------------------------------------------------------- demo

if __name__ == "__main__":
    hidden, ec, heads, k = 32, 16, 4, 2
    N_per, B = 4, 2
    N = N_per * B
    Lc = 6          # ligand atoms
    Lfull = 12      # full sequence length

    key = jax.random.PRNGKey(0)
    kp, k1, k2, k3, k4, k5, k6 = jax.random.split(key, 7)
    params = init_params(kp, hidden, ec, heads, cutoff=10.0)

    res_H = jax.random.normal(k1, (N, 14, hidden), jnp.float32)
    res_X = jax.random.normal(k2, (N, 14, 3), jnp.float32) * 2.0
    res_S = jax.random.randint(k3, (N,), 0, 21)
    batch = jnp.repeat(jnp.arange(B), N_per)
    ligand_pos = jax.random.normal(k4, (B, Lc, 3), jnp.float32) * 2.0
    ligand_feat = jax.random.normal(k5, (B, Lc, hidden), jnp.float32)
    ligand_mask = jnp.asarray(np.array([[1, 1, 1, 1, 1, 0], [1, 1, 1, 1, 0, 0]], np.float32))
    residue_mask = jnp.asarray(np.array([1, 1, 0, 1, 1, 0, 1, 1], bool))
    edit_residue_num = jnp.asarray(np.array([3, 3], np.int32))
    full_seq = jax.random.randint(k6, (B, Lfull), 0, 33)

    r10 = np.zeros((B, Lfull), bool)
    r10[0, 2:6] = True
    r10[1, 3:7] = True
    r10_mask = jnp.asarray(r10)
    fsm = np.zeros((B, Lfull), bool)
    fsm[0, 2:6] = True
    fsm[1, 3:7] = True
    full_seq_mask = jnp.asarray(fsm)

    out = bilevel_encoder_forward(
        params, res_H, res_X, res_S, batch, full_seq, ligand_pos, ligand_feat,
        ligand_mask, edit_residue_num, residue_mask, full_seq_mask, r10_mask,
        hidden=hidden, ec=ec, heads=heads, k=k)

    for o in out:
        jax.block_until_ready(o)
    print("KERNEL_OK")
</pallas_src>

<mosaic_0001>
module attributes {stable_mosaic.version = 11 : i64} {
  func.func @_linear_kernel(%arg0: i32, %arg1: memref<112x32xf32, #tpu.memory_space<vmem>>, %arg2: memref<32x32xbf16, #tpu.memory_space<vmem>>, %arg3: memref<1x32xf32, #tpu.memory_space<vmem>>, %arg4: memref<112x32xbf16, #tpu.memory_space<vmem>>) attributes {dimension_semantics = [#tpu.dimension_semantics<parallel>], iteration_bounds = array<i64: 1>, scalar_prefetch = 0 : i64, scratch_operands = 0 : i64, tpu.core_type = #tpu.core_type<tc>, window_params = [{transform_indices = @transform_0, window_bounds = array<i64: 112, 32>}, {pipeline_mode = #tpu.pipeline_mode<synchronous>, transform_indices = @transform_1, window_bounds = array<i64: 32, 32>}, {pipeline_mode = #tpu.pipeline_mode<synchronous>, transform_indices = @transform_2, window_bounds = array<i64: 1, 32>}, {transform_indices = @transform_3, window_bounds = array<i64: 112, 32>}]} {
    %c0 = arith.constant 0 : index
    %c0_0 = arith.constant 0 : index
    %0 = vector.load %arg1[%c0, %c0_0] : memref<112x32xf32, #tpu.memory_space<vmem>>, vector<112x32xf32>
    %1 = arith.truncf %0 : vector<112x32xf32> to vector<112x32xbf16>
    %c0_1 = arith.constant 0 : index
    %c0_2 = arith.constant 0 : index
    %2 = vector.load %arg2[%c0_1, %c0_2] : memref<32x32xbf16, #tpu.memory_space<vmem>>, vector<32x32xbf16>
    %cst = arith.constant dense<0.000000e+00> : vector<112x32xf32>
    %3 = tpu.matmul %1, %2, %cst {dimension_numbers = #tpu.dot_dimension_numbers<[1], [0], [0], [1], [0, 0, 1, 1], [], []>} : vector<112x32xbf16>, vector<32x32xbf16>, vector<112x32xf32> -> vector<112x32xf32>
    %c0_3 = arith.constant 0 : index
    %c0_4 = arith.constant 0 : index
    %4 = vector.load %arg3[%c0_3, %c0_4] : memref<1x32xf32, #tpu.memory_space<vmem>>, vector<1x32xf32>
    %5 = vector.broadcast %4 : vector<1x32xf32> to vector<112x32xf32>
    %6 = arith.addf %3, %5 : vector<112x32xf32>
    %7 = arith.truncf %6 : vector<112x32xf32> to vector<112x32xbf16>
    %c0_5 = arith.constant 0 : index
    %c0_6 = arith.constant 0 : index
    %8 = vector.load %arg4[%c0_5, %c0_6] : memref<112x32xbf16, #tpu.memory_space<vmem>>, vector<112x32xbf16>
    tpu.vector_store %arg4[%c0_5, %c0_6], %7 {strides = array<i32>} : memref<112x32xbf16, #tpu.memory_space<vmem>>, vector<112x32xbf16>,
    return
  }
  func.func @transform_0(%arg0: i32) -> (i32, i32) {
    %c0_i32 = arith.constant 0 : i32
    %c0_i32_0 = arith.constant 0 : i32
    return %arg0, %c0_i32 : i32, i32
  }
  func.func @transform_1(%arg0: i32) -> (i32, i32) {
    %c0_i32 = arith.constant 0 : i32
    %c0_i32_0 = arith.constant 0 : i32
    %c0_i32_1 = arith.constant 0 : i32
    return %c0_i32, %c0_i32_0 : i32, i32
  }
  func.func @transform_2(%arg0: i32) -> (i32, i32) {
    %c0_i32 = arith.constant 0 : i32
    %c0_i32_0 = arith.constant 0 : i32
    %c0_i32_1 = arith.constant 0 : i32
    return %c0_i32, %c0_i32_0 : i32, i32
  }
  func.func @transform_3(%arg0: i32) -> (i32, i32) {
    %c0_i32 = arith.constant 0 : i32
    %c0_i32_0 = arith.constant 0 : i32
    return %arg0, %c0_i32 : i32, i32
  }
}

</mosaic_0001>

<llo_original>
// kernel: tpu_custom_call.1
$region0: #{tpu_custom_call.1}
  #allocation0 [shape = 'u32[]', space=smem, size = 0x4, offset = 0x4, fixed_abs, tag = 'smem constant byte address 0x4 - core index']
  #allocation1 [shape = 'u32[144,128]{1,0:T(1,128)}', space=vmem, size = 0x12000, scoped, tag = 'internal scratch']
  %s0 = inlined_call_operand.vmem [shape: f32[112,32], index: 0, kind: input, shape index: {}]
  %s1 = inlined_call_operand.vmem [shape: bf16[32,32], index: 1, kind: input, shape index: {}]
  %s2 = inlined_call_operand.vmem [shape: f32[1,32], index: 2, kind: input, shape index: {}]
  %s3 = inlined_call_operand.vmem [shape: bf16[112,32], index: 3, kind: output, shape index: {}]
  %s4 = sld [smem:[#allocation0]]
  $region22: #{tpu_custom_call.1} parent=0
    _
  %s6 = ssub.s32 1, %s4
  %s7 = scalar_select 0, %s6, %s4
  // Predicated region
  $region2: #{tpu_custom_call.1} parent=0 // pred_check
    _
  $region3: #{tpu_custom_call.1} parent=0 // pred_check_branch
    %9 = sbr.rel (0) target = $region5
  $region4: #{tpu_custom_call.1} parent=0 // pred_region
    _
  $region5: #{tpu_custom_call.1} parent=0 // pred_fallthru
    _
  // Predicated region
  $region6: #{tpu_custom_call.1} parent=0 // pred_check
    _
  $region7: #{tpu_custom_call.1} parent=0 // pred_check_branch
    %11 = sbr.rel (0) target = $region9
  $region8: #{tpu_custom_call.1} parent=0 // pred_region
    _
  $region9: #{tpu_custom_call.1} parent=0 // pred_fallthru
    _
  // Predicated region
  $region10: #{tpu_custom_call.1} parent=0 // pred_check
    _
  $region11: #{tpu_custom_call.1} parent=0 // pred_check_branch
    %13 = sbr.rel (0) target = $region13
  $region12: #{tpu_custom_call.1} parent=0 // pred_region
    _
  $region13: #{tpu_custom_call.1} parent=0 // pred_fallthru
    _
  %v15 = vld [vmem:[%s0] sm:$0xff]
  %v16 = vld [vmem:[%s0 + $0x8] sm:$0xff]
  %v17 = vld [vmem:[%s0 + $0x10] sm:$0xff]
  %v18 = vld [vmem:[%s0 + $0x18] sm:$0xff]
  %v19 = vld [vmem:[%s0 + $0x20] sm:$0xff]
  %v20 = vld [vmem:[%s0 + $0x28] sm:$0xff]
  %v21 = vld [vmem:[%s0 + $0x30] sm:$0xff]
  %v22 = vld [vmem:[%s0 + $0x38] sm:$0xff]
  %v23 = vld [vmem:[%s0 + $0x40] sm:$0xff]
  %v24 = vld [vmem:[%s0 + $0x48] sm:$0xff]
  %v25 = vld [vmem:[%s0 + $0x50] sm:$0xff]
  %v26 = vld [vmem:[%s0 + $0x58] sm:$0xff]
  %v27 = vld [vmem:[%s0 + $0x60] sm:$0xff]
  %v28 = vld [vmem:[%s0 + $0x68] sm:$0xff]
  %v29 = vpack.c.bf16 %v16, %v15
  %v30 = vpack.c.bf16 %v18, %v17
  %v31 = vpack.c.bf16 %v20, %v19
  %v32 = vpack.c.bf16 %v22, %v21
  %v33 = vpack.c.bf16 %v24, %v23
  %v34 = vpack.c.bf16 %v26, %v25
  %v35 = vpack.c.bf16 %v28, %v27
  %v36 = vld [vmem:[%s1] sm:$0xf]
  %v37 = vld [vmem:[%s1 + $0x4] sm:$0xf]
  %v38 = vld [vmem:[%s1 + $0x8] sm:$0xf]
  %v39 = vld [vmem:[%s1 + $0xc] sm:$0xf]
  %v40 = vld [vmem:[%s2] sm:$0x1]
  %v42 = vlaneseq
  %v43 = vshrl.u32 %v42, 7
  %v44 = vsub.s32 0, %v43
  %v45 = vrot.slane %v40, %v44
  %v51 = vunpack.c.l.b16 %v36
  %v52 = vunpack.c.l.b16 %v37
  %v53 = vunpack.c.l.b16 %v38
  %v54 = vunpack.c.l.b16 %v39
  %v55 = vpack.c.b16 %v52, %v51
  %v56 = vpack.c.b16 %v54, %v53
  %vm59 = vcmask 261120
  %v61 = vsel %vm59, %v29, 0
  %v64 = vsel %vm59, %v30, 0
  %v67 = vsel %vm59, %v31, 0
  %v70 = vsel %vm59, %v32, 0
  %v73 = vsel %vm59, %v33, 0
  %v76 = vsel %vm59, %v34, 0
  %v79 = vsel %vm59, %v35, 0
  %81 = vmatprep.subr.bf16.mxu0 0
  %82 = vmatpush1.bf16.msra.mxu0 %v55
  %83 = vmatprep.subr.bf16.mxu0 0
  %84 = vmatpush1.bf16.msra.mxu0 %v56
  %85 = vmatprep.subr.bf16.mxu0 0
  %86 = vmatpush1.bf16.msra.mxu0 0
  %87 = vmatprep.subr.bf16.mxu0 0
  %88 = vmatpush1.bf16.msra.mxu0 0
  %89 = vmatprep.subr.bf16.mxu0 0
  %90 = vmatpush1.bf16.msra.mxu0 0
  %91 = vmatprep.subr.bf16.mxu0 0
  %92 = vmatpush1.bf16.msra.mxu0 0
  %93 = vmatprep.subr.bf16.mxu0 0
  %94 = vmatpush1.bf16.msra.mxu0 0
  %95 = vmatprep.subr.bf16.mxu0 0
  %96 = vmatpush1.bf16.msra.mxu0 0
  %97 = vmatprep.subr.bf16.mxu0 0
  %98 = vmatpush1.bf16.msra.mxu0 0
  %99 = vmatprep.subr.bf16.mxu0 0
  %100 = vmatpush1.bf16.msra.mxu0 0
  %101 = vmatprep.subr.bf16.mxu0 0
  %102 = vmatpush1.bf16.msra.mxu0 0
  %103 = vmatprep.subr.bf16.mxu0 0
  %104 = vmatpush1.bf16.msra.mxu0 0
  %105 = vmatprep.subr.bf16.mxu0 0
  %106 = vmatpush1.bf16.msra.mxu0 0
  %107 = vmatprep.subr.bf16.mxu0 0
  %108 = vmatpush1.bf16.msra.mxu0 0
  %109 = vmatprep.subr.bf16.mxu0 0
  %110 = vmatpush1.bf16.msra.mxu0 0
  %111 = vmatprep.subr.bf16.mxu0 0
  %112 = vmatpush1.bf16.msra.mxu0 0
  %113 = vmatprep.mubr.bf16.mxu0 0
  %114 = vmatmul.mubr.bf16.gmra.mrb[0].mxu0 %v61
  %v115 = vpop.f32.mrb[0].mxu0
  %v116 = vadd.f32 %v45, %v115
  %v117 = vpop.f32.mrb[0].mxu0
  %v118 = vpop.f32.mrb[0].mxu0
  %v119 = vadd.f32 %v45, %v118
  %v120 = vpop.f32.mrb[0].mxu0
  %121 = vmatprep.mubr.bf16.mxu0 0
  %122 = vmatmul.mubr.bf16.gmra.mrb[0].mxu0 %v64
  %v123 = vpop.f32.mrb[0].mxu0
  %v124 = vadd.f32 %v45, %v123
  %v125 = vpop.f32.mrb[0].mxu0
  %v126 = vpop.f32.mrb[0].mxu0
  %v127 = vadd.f32 %v45, %v126
  %v128 = vpop.f32.mrb[0].mxu0
  %129 = vmatprep.mubr.bf16.mxu0 0
  %130 = vmatmul.mubr.bf16.gmra.mrb[0].mxu0 %v67
  %v131 = vpop.f32.mrb[0].mxu0
  %v132 = vadd.f32 %v45, %v131
  %v133 = vpop.f32.mrb[0].mxu0
  %v134 = vpop.f32.mrb[0].mxu0
  %v135 = vadd.f32 %v45, %v134
  %v136 = vpop.f32.mrb[0].mxu0
  %137 = vmatprep.mubr.bf16.mxu0 0
  %138 = vmatmul.mubr.bf16.gmra.mrb[0].mxu0 %v70
  %v139 = vpop.f32.mrb[0].mxu0
  %v140 = vadd.f32 %v45, %v139
  %v141 = vpop.f32.mrb[0].mxu0
  %v142 = vpop.f32.mrb[0].mxu0
  %v143 = vadd.f32 %v45, %v142
  %v144 = vpop.f32.mrb[0].mxu0
  %145 = vmatprep.mubr.bf16.mxu0 0
  %146 = vmatmul.mubr.bf16.gmra.mrb[0].mxu0 %v73
  %v147 = vpop.f32.mrb[0].mxu0
  %v148 = vadd.f32 %v45, %v147
  %v149 = vpop.f32.mrb[0].mxu0
  %v150 = vpop.f32.mrb[0].mxu0
  %v151 = vadd.f32 %v45, %v150
  %v152 = vpop.f32.mrb[0].mxu0
  %153 = vmatprep.mubr.bf16.mxu0 0
  %154 = vmatmul.mubr.bf16.gmra.mrb[0].mxu0 %v76
  %v155 = vpop.f32.mrb[0].mxu0
  %v156 = vadd.f32 %v45, %v155
  %v157 = vpop.f32.mrb[0].mxu0
  %v158 = vpop.f32.mrb[0].mxu0
  %v159 = vadd.f32 %v45, %v158
  %v160 = vpop.f32.mrb[0].mxu0
  %161 = vmatprep.mubr.bf16.mxu0 0
  %162 = vmatmul.mubr.bf16.gmra.mrb[0].mxu0 %v79
  %v163 = vpop.f32.mrb[0].mxu0
  %v164 = vadd.f32 %v45, %v163
  %v165 = vpop.f32.mrb[0].mxu0
  %v166 = vpop.f32.mrb[0].mxu0
  %v167 = vadd.f32 %v45, %v166
  %v168 = vpop.f32.mrb[0].mxu0
  %169 = vdwg.mxu0
  %v170 = vpack.c.bf16 %v119, %v116
  %v171 = vpack.c.bf16 %v127, %v124
  %v172 = vpack.c.bf16 %v135, %v132
  %v173 = vpack.c.bf16 %v143, %v140
  %v174 = vpack.c.bf16 %v151, %v148
  %v175 = vpack.c.bf16 %v159, %v156
  %v176 = vpack.c.bf16 %v167, %v164
  %v184 = vunpack.c.l.b16 %v170
  %v185 = vunpack.c.h.b16 %v170
  %v186 = vunpack.c.l.b16 %v171
  %v187 = vunpack.c.h.b16 %v171
  %v188 = vunpack.c.l.b16 %v172
  %v189 = vunpack.c.h.b16 %v172
  %v190 = vunpack.c.l.b16 %v173
  %v191 = vunpack.c.h.b16 %v173
  %v192 = vunpack.c.l.b16 %v174
  %v193 = vunpack.c.h.b16 %v174
  %v194 = vunpack.c.l.b16 %v175
  %v195 = vunpack.c.h.b16 %v175
  %v196 = vunpack.c.l.b16 %v176
  %v197 = vunpack.c.h.b16 %v176
  %v198 = vpack.c.b16 %v184, %v184
  %v199 = vpack.c.b16 %v185, %v185
  %v200 = vpack.c.b16 %v186, %v186
  %v201 = vpack.c.b16 %v187, %v187
  %v202 = vpack.c.b16 %v188, %v188
  %v203 = vpack.c.b16 %v189, %v189
  %v204 = vpack.c.b16 %v190, %v190
  %v205 = vpack.c.b16 %v191, %v191
  %v206 = vpack.c.b16 %v192, %v192
  %v207 = vpack.c.b16 %v193, %v193
  %v208 = vpack.c.b16 %v194, %v194
  %v209 = vpack.c.b16 %v195, %v195
  %v210 = vpack.c.b16 %v196, %v196
  %v211 = vpack.c.b16 %v197, %v197
  %vm226 = vcmask 257024
  %227 = vst.msk [vmem:[%s3] sm:$0xf] %vm226, %v198
  %228 = vst.msk [vmem:[%s3 + $0x4] sm:$0xf] %vm226, %v199
  %229 = vst.msk [vmem:[%s3 + $0x8] sm:$0xf] %vm226, %v200
  %230 = vst.msk [vmem:[%s3 + $0xc] sm:$0xf] %vm226, %v201
  %231 = vst.msk [vmem:[%s3 + $0x10] sm:$0xf] %vm226, %v202
  %232 = vst.msk [vmem:[%s3 + $0x14] sm:$0xf] %vm226, %v203
  %233 = vst.msk [vmem:[%s3 + $0x18] sm:$0xf] %vm226, %v204
  %234 = vst.msk [vmem:[%s3 + $0x1c] sm:$0xf] %vm226, %v205
  %235 = vst.msk [vmem:[%s3 + $0x20] sm:$0xf] %vm226, %v206
  %236 = vst.msk [vmem:[%s3 + $0x24] sm:$0xf] %vm226, %v207
  %237 = vst.msk [vmem:[%s3 + $0x28] sm:$0xf] %vm226, %v208
  %238 = vst.msk [vmem:[%s3 + $0x2c] sm:$0xf] %vm226, %v209
  %239 = vst.msk [vmem:[%s3 + $0x30] sm:$0xf] %vm226, %v210
  %240 = vst.msk [vmem:[%s3 + $0x34] sm:$0xf] %vm226, %v211
  // Predicated region
  $region14: #{tpu_custom_call.1} parent=0 // pred_check
    _
  $region15: #{tpu_custom_call.1} parent=0 // pred_check_branch
    %242 = sbr.rel (0) target = $region17
  $region16: #{tpu_custom_call.1} parent=0 // pred_region
    _
  $region17: #{tpu_custom_call.1} parent=0 // pred_fallthru
    _
  // Predicated region
  $region18: #{tpu_custom_call.1} parent=0 // pred_check
    _
  $region19: #{tpu_custom_call.1} parent=0 // pred_check_branch
    %244 = sbr.rel (0) target = $region21
  $region20: #{tpu_custom_call.1} parent=0 // pred_region
    _
  $region21: #{tpu_custom_call.1} parent=0 // pred_fallthru
    _

</llo_original>
